<compile_context>
chip_gen: v7x
topology: tpu7x:2x2x1
jax: 0.10.0
libtpu: 0.0.40
codegen_flags: <defaults>
</compile_context>

<pallas_src>
from functools import partial

import jax
import jax.numpy as jnp
from jax.experimental import pallas as pl
from jax.experimental.pallas import tpu as pltpu


def make_dense_block_kernel(depth, in_dim, growth, out_dim, out_pad):
    """Build a kernel that unrolls `depth` dense-block layers with partial-dot accumulation."""

    def kernel(x_ref, *refs):
        # refs = (w0_0, b0, w1_0, w1_1, b1, ..., o_ref)
        o_ref = refs[-1]
        params = refs[:-1]

        x0 = x_ref[...]                                   # (TB, in_dim), input dtype
        ys = []
        p = 0
        for i in range(depth):
            # Piece against the original input x0: (TB, in_dim) @ (in_dim, growth)
            acc = jnp.dot(x0, params[p][...], preferred_element_type=jnp.float32)
            p += 1
            # Pieces against every previously produced y_j: (TB, growth) @ (growth, growth)
            for j in range(i):
                acc = acc + jnp.dot(ys[j], params[p][...],
                                    preferred_element_type=jnp.float32)
                p += 1
            acc = acc + params[p][...].astype(jnp.float32)  # bias (1, growth), broadcasts
            p += 1
            y = jnp.maximum(acc, 0.0).astype(x0.dtype)      # ReLU
            ys.append(y)

        # Single lane-dense store: [x0 | y_0 | ... | y_{d-1} | zero-pad] -> (TB, out_pad).
        pieces = [x0.astype(o_ref.dtype)] + [y.astype(o_ref.dtype) for y in ys]
        if out_pad > out_dim:
            pieces.append(jnp.zeros((x0.shape[0], out_pad - out_dim), dtype=o_ref.dtype))
        o_ref[...] = jnp.concatenate(pieces, axis=1)

    return kernel


def _prep_params(vs, gs, bs, in_dim, growth, dtype):
    """Fold weight_norm (dim=0), split per-source, transpose to (in_piece, growth)."""
    flat = []
    for i, (v, g, b) in enumerate(zip(vs, gs, bs)):
        v32 = v.astype(jnp.float32)
        # W[o, :] = g[o] * v[o, :] / ||v[o, :]||   (no eps, matching torch weight_norm;
        # a zero row in v would NaN in PyTorch too).
        row_norm = jnp.sqrt(jnp.sum(v32 * v32, axis=1, keepdims=True))
        w_eff = (g.astype(jnp.float32)[:, None] / row_norm) * v32   # (growth, in_dim+i*growth)
        w_t = w_eff.T.astype(dtype)                                 # (in_dim+i*growth, growth)
        flat.append(w_t[:in_dim, :])                                # piece vs. x0
        for j in range(i):
            flat.append(w_t[in_dim + j * growth: in_dim + (j + 1) * growth, :])
        flat.append(b.astype(dtype)[None, :])                       # (1, growth)
    return flat


@partial(jax.jit, static_argnames=("tb",))
def _dense_block_jit(x, vs, gs, bs, tb):
    depth = len(vs)
    growth = vs[0].shape[0]
    B, in_dim = x.shape
    out_dim = in_dim + depth * growth
    out_pad = ((out_dim + 127) // 128) * 128   # lane-dense output width

    params = _prep_params(vs, gs, bs, in_dim, growth, x.dtype)

    grid = (pl.cdiv(B, tb),)

    # x / out blocks walk the batch; weights & biases use a constant index_map (resident).
    in_specs = [pl.BlockSpec((tb, in_dim), lambda i: (i, 0))]
    in_specs += [pl.BlockSpec(p.shape, lambda i: (0, 0)) for p in params]
    out_spec = pl.BlockSpec((tb, out_pad), lambda i: (i, 0))

    kernel = make_dense_block_kernel(depth, in_dim, growth, out_dim, out_pad)

    out_padded = pl.pallas_call(
        kernel,
        out_shape=jax.ShapeDtypeStruct((B, out_pad), x.dtype),
        grid=grid,
        in_specs=in_specs,
        out_specs=out_spec,
        compiler_params=pltpu.CompilerParams(
            dimension_semantics=("parallel",),   # batch tiles are independent (v7x: 2 TCs)
        ),
    )(x, *params)

    return out_padded[:, :out_dim]


def dense_block_forward(x, vs, gs, bs, *, tb=None):
    """x: (B, input_dim); vs[i]: (growth, input_dim + i*growth); gs[i]/bs[i]: (growth,)."""
    B = x.shape[0]
    if tb is None:
        # Rows are independent, so any partial last tile is simply dropped on writeback.
        # Cap at 512 so double-buffered blocks stay far below v7x's 64 MiB VMEM.
        tb = B if B <= 512 else 512
    return _dense_block_jit(x, tuple(vs), tuple(gs), tuple(bs), int(tb))


def dense_block_reference(x, vs, gs, bs):
    """Pure-JAX reference mirroring the PyTorch forward."""
    x = x.astype(jnp.float32)
    for v, g, b in zip(vs, gs, bs):
        row_norm = jnp.sqrt(jnp.sum(v * v, axis=1, keepdims=True))
        w = (g[:, None] / row_norm) * v
        y = jnp.maximum(x @ w.T + b[None, :], 0.0)
        x = jnp.concatenate([x, y], axis=1)
    return x


def _make_inputs(key, B, input_dim, growth, depth):
    kx, key = jax.random.split(key)
    x = jax.random.normal(kx, (B, input_dim), dtype=jnp.float32)
    vs, gs, bs = [], [], []
    for i in range(depth):
        in_i = input_dim + i * growth
        kv, kg, kb, key = jax.random.split(key, 4)
        vs.append(jax.random.normal(kv, (growth, in_i), dtype=jnp.float32) * 0.1)
        gs.append(1.0 + 0.01 * jax.random.normal(kg, (growth,), dtype=jnp.float32))
        bs.append(0.1 * jax.random.normal(kb, (growth,), dtype=jnp.float32))
    return x, vs, gs, bs


if __name__ == "__main__":
    # DenseBlock(input_dim=32, growth=16, depth=3), batch=8 (single tile).
    B, INPUT_DIM, GROWTH, DEPTH = 8, 32, 16, 3
    key = jax.random.PRNGKey(0)

    x, vs, gs, bs = _make_inputs(key, B, INPUT_DIM, GROWTH, DEPTH)
    out = jax.block_until_ready(dense_block_forward(x, vs, gs, bs))
    ref = dense_block_reference(x, vs, gs, bs)
    assert out.shape == (B, INPUT_DIM + DEPTH * GROWTH), out.shape
    assert jnp.allclose(out, ref, atol=1e-4, rtol=1e-4), float(jnp.max(jnp.abs(out - ref)))

    # Multi-tile check: B=48 with TB=16 exercises the batch grid + resident weights.
    x2, vs2, gs2, bs2 = _make_inputs(jax.random.PRNGKey(1), 48, INPUT_DIM, GROWTH, DEPTH)
    out2 = jax.block_until_ready(dense_block_forward(x2, vs2, gs2, bs2, tb=16))
    ref2 = dense_block_reference(x2, vs2, gs2, bs2)
    assert out2.shape == (48, INPUT_DIM + DEPTH * GROWTH), out2.shape
    assert jnp.allclose(out2, ref2, atol=1e-4, rtol=1e-4), float(jnp.max(jnp.abs(out2 - ref2)))

    print("KERNEL_OK")
</pallas_src>

<mosaic_0001>
module attributes {stable_mosaic.version = 11 : i64} {
  func.func @kernel(%arg0: i32, %arg1: memref<8x32xf32, #tpu.memory_space<vmem>>, %arg2: memref<32x16xf32, #tpu.memory_space<vmem>>, %arg3: memref<1x16xf32, #tpu.memory_space<vmem>>, %arg4: memref<32x16xf32, #tpu.memory_space<vmem>>, %arg5: memref<16x16xf32, #tpu.memory_space<vmem>>, %arg6: memref<1x16xf32, #tpu.memory_space<vmem>>, %arg7: memref<32x16xf32, #tpu.memory_space<vmem>>, %arg8: memref<16x16xf32, #tpu.memory_space<vmem>>, %arg9: memref<16x16xf32, #tpu.memory_space<vmem>>, %arg10: memref<1x16xf32, #tpu.memory_space<vmem>>, %arg11: memref<8x128xf32, #tpu.memory_space<vmem>>) attributes {dimension_semantics = [#tpu.dimension_semantics<parallel>], iteration_bounds = array<i64: 1>, scalar_prefetch = 0 : i64, scratch_operands = 0 : i64, tpu.core_type = #tpu.core_type<tc>, window_params = [{transform_indices = @transform_0, window_bounds = array<i64: 8, 32>}, {pipeline_mode = #tpu.pipeline_mode<synchronous>, transform_indices = @transform_1, window_bounds = array<i64: 32, 16>}, {pipeline_mode = #tpu.pipeline_mode<synchronous>, transform_indices = @transform_2, window_bounds = array<i64: 1, 16>}, {pipeline_mode = #tpu.pipeline_mode<synchronous>, transform_indices = @transform_3, window_bounds = array<i64: 32, 16>}, {pipeline_mode = #tpu.pipeline_mode<synchronous>, transform_indices = @transform_4, window_bounds = array<i64: 16, 16>}, {pipeline_mode = #tpu.pipeline_mode<synchronous>, transform_indices = @transform_5, window_bounds = array<i64: 1, 16>}, {pipeline_mode = #tpu.pipeline_mode<synchronous>, transform_indices = @transform_6, window_bounds = array<i64: 32, 16>}, {pipeline_mode = #tpu.pipeline_mode<synchronous>, transform_indices = @transform_7, window_bounds = array<i64: 16, 16>}, {pipeline_mode = #tpu.pipeline_mode<synchronous>, transform_indices = @transform_8, window_bounds = array<i64: 16, 16>}, {pipeline_mode = #tpu.pipeline_mode<synchronous>, transform_indices = @transform_9, window_bounds = array<i64: 1, 16>}, {transform_indices = @transform_10, window_bounds = array<i64: 8, 128>}]} {
    %c0 = arith.constant 0 : index
    %c0_0 = arith.constant 0 : index
    %0 = vector.load %arg1[%c0, %c0_0] : memref<8x32xf32, #tpu.memory_space<vmem>>, vector<8x32xf32>
    %c0_1 = arith.constant 0 : index
    %c0_2 = arith.constant 0 : index
    %1 = vector.load %arg2[%c0_1, %c0_2] : memref<32x16xf32, #tpu.memory_space<vmem>>, vector<32x16xf32>
    %cst = arith.constant dense<0.000000e+00> : vector<8x16xf32>
    %2 = tpu.matmul %0, %1, %cst {dimension_numbers = #tpu.dot_dimension_numbers<[1], [0], [0], [1], [0, 0, 1, 1], [], []>} : vector<8x32xf32>, vector<32x16xf32>, vector<8x16xf32> -> vector<8x16xf32>
    %c0_3 = arith.constant 0 : index
    %c0_4 = arith.constant 0 : index
    %3 = vector.load %arg3[%c0_3, %c0_4] : memref<1x16xf32, #tpu.memory_space<vmem>>, vector<1x16xf32>
    %4 = vector.broadcast %3 : vector<1x16xf32> to vector<8x16xf32>
    %5 = arith.addf %2, %4 : vector<8x16xf32>
    %cst_5 = arith.constant 0.000000e+00 : f32
    %6 = vector.broadcast %cst_5 : f32 to vector<8x16xf32>
    %7 = arith.maximumf %5, %6 : vector<8x16xf32>
    %c0_6 = arith.constant 0 : index
    %c0_7 = arith.constant 0 : index
    %8 = vector.load %arg4[%c0_6, %c0_7] : memref<32x16xf32, #tpu.memory_space<vmem>>, vector<32x16xf32>
    %cst_8 = arith.constant dense<0.000000e+00> : vector<8x16xf32>
    %9 = tpu.matmul %0, %8, %cst_8 {dimension_numbers = #tpu.dot_dimension_numbers<[1], [0], [0], [1], [0, 0, 1, 1], [], []>} : vector<8x32xf32>, vector<32x16xf32>, vector<8x16xf32> -> vector<8x16xf32>
    %c0_9 = arith.constant 0 : index
    %c0_10 = arith.constant 0 : index
    %10 = vector.load %arg5[%c0_9, %c0_10] : memref<16x16xf32, #tpu.memory_space<vmem>>, vector<16x16xf32>
    %cst_11 = arith.constant dense<0.000000e+00> : vector<8x16xf32>
    %11 = tpu.matmul %7, %10, %cst_11 {dimension_numbers = #tpu.dot_dimension_numbers<[1], [0], [0], [1], [0, 0, 1, 1], [], []>} : vector<8x16xf32>, vector<16x16xf32>, vector<8x16xf32> -> vector<8x16xf32>
    %12 = arith.addf %9, %11 : vector<8x16xf32>
    %c0_12 = arith.constant 0 : index
    %c0_13 = arith.constant 0 : index
    %13 = vector.load %arg6[%c0_12, %c0_13] : memref<1x16xf32, #tpu.memory_space<vmem>>, vector<1x16xf32>
    %14 = vector.broadcast %13 : vector<1x16xf32> to vector<8x16xf32>
    %15 = arith.addf %12, %14 : vector<8x16xf32>
    %cst_14 = arith.constant 0.000000e+00 : f32
    %16 = vector.broadcast %cst_14 : f32 to vector<8x16xf32>
    %17 = arith.maximumf %15, %16 : vector<8x16xf32>
    %c0_15 = arith.constant 0 : index
    %c0_16 = arith.constant 0 : index
    %18 = vector.load %arg7[%c0_15, %c0_16] : memref<32x16xf32, #tpu.memory_space<vmem>>, vector<32x16xf32>
    %cst_17 = arith.constant dense<0.000000e+00> : vector<8x16xf32>
    %19 = tpu.matmul %0, %18, %cst_17 {dimension_numbers = #tpu.dot_dimension_numbers<[1], [0], [0], [1], [0, 0, 1, 1], [], []>} : vector<8x32xf32>, vector<32x16xf32>, vector<8x16xf32> -> vector<8x16xf32>
    %c0_18 = arith.constant 0 : index
    %c0_19 = arith.constant 0 : index
    %20 = vector.load %arg8[%c0_18, %c0_19] : memref<16x16xf32, #tpu.memory_space<vmem>>, vector<16x16xf32>
    %cst_20 = arith.constant dense<0.000000e+00> : vector<8x16xf32>
    %21 = tpu.matmul %7, %20, %cst_20 {dimension_numbers = #tpu.dot_dimension_numbers<[1], [0], [0], [1], [0, 0, 1, 1], [], []>} : vector<8x16xf32>, vector<16x16xf32>, vector<8x16xf32> -> vector<8x16xf32>
    %22 = arith.addf %19, %21 : vector<8x16xf32>
    %c0_21 = arith.constant 0 : index
    %c0_22 = arith.constant 0 : index
    %23 = vector.load %arg9[%c0_21, %c0_22] : memref<16x16xf32, #tpu.memory_space<vmem>>, vector<16x16xf32>
    %cst_23 = arith.constant dense<0.000000e+00> : vector<8x16xf32>
    %24 = tpu.matmul %17, %23, %cst_23 {dimension_numbers = #tpu.dot_dimension_numbers<[1], [0], [0], [1], [0, 0, 1, 1], [], []>} : vector<8x16xf32>, vector<16x16xf32>, vector<8x16xf32> -> vector<8x16xf32>
    %25 = arith.addf %22, %24 : vector<8x16xf32>
    %c0_24 = arith.constant 0 : index
    %c0_25 = arith.constant 0 : index
    %26 = vector.load %arg10[%c0_24, %c0_25] : memref<1x16xf32, #tpu.memory_space<vmem>>, vector<1x16xf32>
    %27 = vector.broadcast %26 : vector<1x16xf32> to vector<8x16xf32>
    %28 = arith.addf %25, %27 : vector<8x16xf32>
    %cst_26 = arith.constant 0.000000e+00 : f32
    %29 = vector.broadcast %cst_26 : f32 to vector<8x16xf32>
    %30 = arith.maximumf %28, %29 : vector<8x16xf32>
    %cst_27 = arith.constant 0.000000e+00 : f32
    %31 = vector.broadcast %cst_27 : f32 to vector<8x48xf32>
    %32 = tpu.concatenate %0, %7, %17, %30, %31 in 1 : vector<8x32xf32>, vector<8x16xf32>, vector<8x16xf32>, vector<8x16xf32>, vector<8x48xf32> -> vector<8x128xf32>
    %c0_28 = arith.constant 0 : index
    %c0_29 = arith.constant 0 : index
    %33 = vector.load %arg11[%c0_28, %c0_29] : memref<8x128xf32, #tpu.memory_space<vmem>>, vector<8x128xf32>
    tpu.vector_store %arg11[%c0_28, %c0_29], %32 {strides = array<i32>} : memref<8x128xf32, #tpu.memory_space<vmem>>, vector<8x128xf32>,
    return
  }
  func.func @transform_0(%arg0: i32) -> (i32, i32) {
    %c0_i32 = arith.constant 0 : i32
    %c0_i32_0 = arith.constant 0 : i32
    return %arg0, %c0_i32 : i32, i32
  }
  func.func @transform_1(%arg0: i32) -> (i32, i32) {
    %c0_i32 = arith.constant 0 : i32
    %c0_i32_0 = arith.constant 0 : i32
    %c0_i32_1 = arith.constant 0 : i32
    return %c0_i32, %c0_i32_0 : i32, i32
  }
  func.func @transform_2(%arg0: i32) -> (i32, i32) {
    %c0_i32 = arith.constant 0 : i32
    %c0_i32_0 = arith.constant 0 : i32
    %c0_i32_1 = arith.constant 0 : i32
    return %c0_i32, %c0_i32_0 : i32, i32
  }
  func.func @transform_3(%arg0: i32) -> (i32, i32) {
    %c0_i32 = arith.constant 0 : i32
    %c0_i32_0 = arith.constant 0 : i32
    %c0_i32_1 = arith.constant 0 : i32
    return %c0_i32, %c0_i32_0 : i32, i32
  }
  func.func @transform_4(%arg0: i32) -> (i32, i32) {
    %c0_i32 = arith.constant 0 : i32
    %c0_i32_0 = arith.constant 0 : i32
    %c0_i32_1 = arith.constant 0 : i32
    return %c0_i32, %c0_i32_0 : i32, i32
  }
  func.func @transform_5(%arg0: i32) -> (i32, i32) {
    %c0_i32 = arith.constant 0 : i32
    %c0_i32_0 = arith.constant 0 : i32
    %c0_i32_1 = arith.constant 0 : i32
    return %c0_i32, %c0_i32_0 : i32, i32
  }
  func.func @transform_6(%arg0: i32) -> (i32, i32) {
    %c0_i32 = arith.constant 0 : i32
    %c0_i32_0 = arith.constant 0 : i32
    %c0_i32_1 = arith.constant 0 : i32
    return %c0_i32, %c0_i32_0 : i32, i32
  }
  func.func @transform_7(%arg0: i32) -> (i32, i32) {
    %c0_i32 = arith.constant 0 : i32
    %c0_i32_0 = arith.constant 0 : i32
    %c0_i32_1 = arith.constant 0 : i32
    return %c0_i32, %c0_i32_0 : i32, i32
  }
  func.func @transform_8(%arg0: i32) -> (i32, i32) {
    %c0_i32 = arith.constant 0 : i32
    %c0_i32_0 = arith.constant 0 : i32
    %c0_i32_1 = arith.constant 0 : i32
    return %c0_i32, %c0_i32_0 : i32, i32
  }
  func.func @transform_9(%arg0: i32) -> (i32, i32) {
    %c0_i32 = arith.constant 0 : i32
    %c0_i32_0 = arith.constant 0 : i32
    %c0_i32_1 = arith.constant 0 : i32
    return %c0_i32, %c0_i32_0 : i32, i32
  }
  func.func @transform_10(%arg0: i32) -> (i32, i32) {
    %c0_i32 = arith.constant 0 : i32
    %c0_i32_0 = arith.constant 0 : i32
    return %arg0, %c0_i32 : i32, i32
  }
}

</mosaic_0001>

<llo_original>
// kernel: _dense_block_jit.1
$region0: #{_dense_block_jit.1}
  #allocation0 [shape = 'u32[]', space=smem, size = 0x4, offset = 0x4, fixed_abs, tag = 'smem constant byte address 0x4 - core index']
  #allocation1 [shape = 'u32[144,128]{1,0:T(1,128)}', space=vmem, size = 0x12000, scoped, tag = 'internal scratch']
  %s0 = inlined_call_operand.vmem [shape: f32[8,32], index: 0, kind: input, shape index: {}]
  %s1 = inlined_call_operand.vmem [shape: f32[32,16], index: 1, kind: input, shape index: {}]
  %s2 = inlined_call_operand.vmem [shape: f32[1,16], index: 2, kind: input, shape index: {}]
  %s3 = inlined_call_operand.vmem [shape: f32[32,16], index: 3, kind: input, shape index: {}]
  %s4 = inlined_call_operand.vmem [shape: f32[16,16], index: 4, kind: input, shape index: {}]
  %s5 = inlined_call_operand.vmem [shape: f32[1,16], index: 5, kind: input, shape index: {}]
  %s6 = inlined_call_operand.vmem [shape: f32[32,16], index: 6, kind: input, shape index: {}]
  %s7 = inlined_call_operand.vmem [shape: f32[16,16], index: 7, kind: input, shape index: {}]
  %s8 = inlined_call_operand.vmem [shape: f32[16,16], index: 8, kind: input, shape index: {}]
  %s9 = inlined_call_operand.vmem [shape: f32[1,16], index: 9, kind: input, shape index: {}]
  %s10 = inlined_call_operand.hbm [shape: f32[8,128], index: 10, kind: output, shape index: {}]
  %s11 = sld [smem:[#allocation0]]
  $region50: #{_dense_block_jit.1} parent=0
    _
  %s13 = ssub.s32 1, %s11
  %s14 = scalar_select 0, %s13, %s11
  $region1: #{_dense_block_jit.1} parent=0
    #allocation2 [shape = 'u8[4096]{0}', space=vmem, size = 0x1000, scoped, tag = 'output window, operand 0, single buffered']
    #allocation3 [shape = 's32[1]{0}', space=sflag, size = 0x4, scoped, tag = 'scoped memory for _dense_block_jit.1']
    %15 = vsyncpa [#allocation3], 0
    // Predicated region
    $region2: #{_dense_block_jit.1} parent=1 // pred_check
      _
    $region3: #{_dense_block_jit.1} parent=1 // pred_check_branch
      %17 = sbr.rel (0) target = $region5
    $region4: #{_dense_block_jit.1} parent=1 // pred_region
      _
    $region5: #{_dense_block_jit.1} parent=1 // pred_fallthru
      _
    // Predicated region
    $region6: #{_dense_block_jit.1} parent=1 // pred_check
      _
    $region7: #{_dense_block_jit.1} parent=1 // pred_check_branch
      %19 = sbr.rel (0) target = $region9
    $region8: #{_dense_block_jit.1} parent=1 // pred_region
      _
    $region9: #{_dense_block_jit.1} parent=1 // pred_fallthru
      _
    // Predicated region
    $region10: #{_dense_block_jit.1} parent=1 // pred_check
      _
    $region11: #{_dense_block_jit.1} parent=1 // pred_check_branch
      %21 = sbr.rel (0) target = $region13
    $region12: #{_dense_block_jit.1} parent=1 // pred_region
      _
    $region13: #{_dense_block_jit.1} parent=1 // pred_fallthru
      _
    // Predicated region
    $region14: #{_dense_block_jit.1} parent=1 // pred_check
      _
    $region15: #{_dense_block_jit.1} parent=1 // pred_check_branch
      %23 = sbr.rel (0) target = $region17
    $region16: #{_dense_block_jit.1} parent=1 // pred_region
      _
    $region17: #{_dense_block_jit.1} parent=1 // pred_fallthru
      _
    // Predicated region
    $region18: #{_dense_block_jit.1} parent=1 // pred_check
      _
    $region19: #{_dense_block_jit.1} parent=1 // pred_check_branch
      %25 = sbr.rel (0) target = $region21
    $region20: #{_dense_block_jit.1} parent=1 // pred_region
      _
    $region21: #{_dense_block_jit.1} parent=1 // pred_fallthru
      _
    // Predicated region
    $region22: #{_dense_block_jit.1} parent=1 // pred_check
      _
    $region23: #{_dense_block_jit.1} parent=1 // pred_check_branch
      %27 = sbr.rel (0) target = $region25
    $region24: #{_dense_block_jit.1} parent=1 // pred_region
      _
    $region25: #{_dense_block_jit.1} parent=1 // pred_fallthru
      _
    // Predicated region
    $region26: #{_dense_block_jit.1} parent=1 // pred_check
      _
    $region27: #{_dense_block_jit.1} parent=1 // pred_check_branch
      %29 = sbr.rel (0) target = $region29
    $region28: #{_dense_block_jit.1} parent=1 // pred_region
      _
    $region29: #{_dense_block_jit.1} parent=1 // pred_fallthru
      _
    // Predicated region
    $region30: #{_dense_block_jit.1} parent=1 // pred_check
      _
    $region31: #{_dense_block_jit.1} parent=1 // pred_check_branch
      %31 = sbr.rel (0) target = $region33
    $region32: #{_dense_block_jit.1} parent=1 // pred_region
      _
    $region33: #{_dense_block_jit.1} parent=1 // pred_fallthru
      _
    // Predicated region
    $region34: #{_dense_block_jit.1} parent=1 // pred_check
      _
    $region35: #{_dense_block_jit.1} parent=1 // pred_check_branch
      %33 = sbr.rel (0) target = $region37
    $region36: #{_dense_block_jit.1} parent=1 // pred_region
      _
    $region37: #{_dense_block_jit.1} parent=1 // pred_fallthru
      _
    // Predicated region
    $region38: #{_dense_block_jit.1} parent=1 // pred_check
      _
    $region39: #{_dense_block_jit.1} parent=1 // pred_check_branch
      %35 = sbr.rel (0) target = $region41
    $region40: #{_dense_block_jit.1} parent=1 // pred_region
      _
    $region41: #{_dense_block_jit.1} parent=1 // pred_fallthru
      _
    %v36 = vld [vmem:[%s0] sm:$0xff]
    %v37 = vld [vmem:[%s1] sm:$0xff]
    %v38 = vld [vmem:[%s1 + $0x8] sm:$0xff]
    %v39 = vld [vmem:[%s1 + $0x10] sm:$0xff]
    %v40 = vld [vmem:[%s1 + $0x18] sm:$0xff]
    %v41 = vld [vmem:[%s2] sm:$0x1]
    %v43 = vlaneseq
    %v44 = vshrl.u32 %v43, 7
    %v45 = vsub.s32 0, %v44
    %v46 = vrot.slane %v41, %v45
    %vm48 = vcmask 261120
    %v50 = vsel %vm48, %v36, 0
    %52 = vmatprep.subr.mxu0 0.0
    %53 = vmatpush1.msra.mxu0 %v37
    %54 = vmatprep.subr.mxu0 0.0
    %55 = vmatpush1.msra.mxu0 %v38
    %56 = vmatprep.subr.mxu0 0.0
    %57 = vmatpush1.msra.mxu0 %v39
    %58 = vmatprep.subr.mxu0 0.0
    %59 = vmatpush1.msra.mxu0 %v40
    %60 = vmatprep.subr.mxu0 0.0
    %61 = vmatpush1.msra.mxu0 0.0
    %62 = vmatprep.subr.mxu0 0.0
    %63 = vmatpush1.msra.mxu0 0.0
    %64 = vmatprep.subr.mxu0 0.0
    %65 = vmatpush1.msra.mxu0 0.0
    %66 = vmatprep.subr.mxu0 0.0
    %67 = vmatpush1.msra.mxu0 0.0
    %68 = vmatprep.subr.mxu0 0.0
    %69 = vmatpush1.msra.mxu0 0.0
    %70 = vmatprep.subr.mxu0 0.0
    %71 = vmatpush1.msra.mxu0 0.0
    %72 = vmatprep.subr.mxu0 0.0
    %73 = vmatpush1.msra.mxu0 0.0
    %74 = vmatprep.subr.mxu0 0.0
    %75 = vmatpush1.msra.mxu0 0.0
    %76 = vmatprep.subr.mxu0 0.0
    %77 = vmatpush1.msra.mxu0 0.0
    %78 = vmatprep.subr.mxu0 0.0
    %79 = vmatpush1.msra.mxu0 0.0
    %80 = vmatprep.subr.mxu0 0.0
    %81 = vmatpush1.msra.mxu0 0.0
    %82 = vmatprep.subr.mxu0 0.0
    %83 = vmatpush1.msra.mxu0 0.0
    %84 = vmatprep.subr.mxu0 0.0
    %85 = vmatpush1.msra.mxu0 0.0
    %86 = vmatprep.subr.mxu0 0.0
    %87 = vmatpush1.msra.mxu0 0.0
    %88 = vmatprep.subr.mxu0 0.0
    %89 = vmatpush1.msra.mxu0 0.0
    %90 = vmatprep.subr.mxu0 0.0
    %91 = vmatpush1.msra.mxu0 0.0
    %92 = vmatprep.subr.mxu0 0.0
    %93 = vmatpush1.msra.mxu0 0.0
    %94 = vmatprep.subr.mxu0 0.0
    %95 = vmatpush1.msra.mxu0 0.0
    %96 = vmatprep.subr.mxu0 0.0
    %97 = vmatpush1.msra.mxu0 0.0
    %98 = vmatprep.subr.mxu0 0.0
    %99 = vmatpush1.msra.mxu0 0.0
    %100 = vmatprep.subr.mxu0 0.0
    %101 = vmatpush1.msra.mxu0 0.0
    %102 = vmatprep.subr.mxu0 0.0
    %103 = vmatpush1.msra.mxu0 0.0
    %104 = vmatprep.subr.mxu0 0.0
    %105 = vmatpush1.msra.mxu0 0.0
    %106 = vmatprep.subr.mxu0 0.0
    %107 = vmatpush1.msra.mxu0 0.0
    %108 = vmatprep.subr.mxu0 0.0
    %109 = vmatpush1.msra.mxu0 0.0
    %110 = vmatprep.subr.mxu0 0.0
    %111 = vmatpush1.msra.mxu0 0.0
    %112 = vmatprep.subr.mxu0 0.0
    %113 = vmatpush1.msra.mxu0 0.0
    %114 = vmatprep.subr.mxu0 0.0
    %115 = vmatpush1.msra.mxu0 0.0
    %116 = vmatprep.mubr.f32.mxu0 0.0
    %117 = vmatmul.mubr.f32.gmra.mrb[0].mxu0 %v50
    %v118 = vpop.f32.mrb[0].mxu0
    %v119 = vadd.f32 %v46, %v118
    %v120 = vpop.f32.mrb[0].mxu0
    %121 = vdwg.mxu0
    %v122 = vmax.f32 %v119, 0.0
    %v123 = vld [vmem:[%s3] sm:$0xff]
    %v124 = vld [vmem:[%s3 + $0x8] sm:$0xff]
    %v125 = vld [vmem:[%s3 + $0x10] sm:$0xff]
    %v126 = vld [vmem:[%s3 + $0x18] sm:$0xff]
    %v127 = vld [vmem:[%s4] sm:$0xff]
    %v128 = vld [vmem:[%s4 + $0x8] sm:$0xff]
    %vm129 = vcmask 130048
    %v131 = vsel %vm129, %v122, 0
    %133 = vmatprep.subr.mxu0 0.0
    %134 = vmatpush1.msra.mxu0 %v127
    %135 = vmatprep.subr.mxu0 0.0
    %136 = vmatpush1.msra.mxu0 %v128
    %137 = vmatprep.subr.mxu0 0.0
    %138 = vmatpush1.msra.mxu0 0.0
    %139 = vmatprep.subr.mxu0 0.0
    %140 = vmatpush1.msra.mxu0 0.0
    %141 = vmatprep.subr.mxu0 0.0
    %142 = vmatpush1.msra.mxu0 0.0
    %143 = vmatprep.subr.mxu0 0.0
    %144 = vmatpush1.msra.mxu0 0.0
    %145 = vmatprep.subr.mxu0 0.0
    %146 = vmatpush1.msra.mxu0 0.0
    %147 = vmatprep.subr.mxu0 0.0
    %148 = vmatpush1.msra.mxu0 0.0
    %149 = vmatprep.subr.mxu0 0.0
    %150 = vmatpush1.msra.mxu0 0.0
    %151 = vmatprep.subr.mxu0 0.0
    %152 = vmatpush1.msra.mxu0 0.0
    %153 = vmatprep.subr.mxu0 0.0
    %154 = vmatpush1.msra.mxu0 0.0
    %155 = vmatprep.subr.mxu0 0.0
    %156 = vmatpush1.msra.mxu0 0.0
    %157 = vmatprep.subr.mxu0 0.0
    %158 = vmatpush1.msra.mxu0 0.0
    %159 = vmatprep.subr.mxu0 0.0
    %160 = vmatpush1.msra.mxu0 0.0
    %161 = vmatprep.subr.mxu0 0.0
    %162 = vmatpush1.msra.mxu0 0.0
    %163 = vmatprep.subr.mxu0 0.0
    %164 = vmatpush1.msra.mxu0 0.0
    %165 = vmatprep.subr.mxu0 0.0
    %166 = vmatpush1.msra.mxu0 0.0
    %167 = vmatprep.subr.mxu0 0.0
    %168 = vmatpush1.msra.mxu0 0.0
    %169 = vmatprep.subr.mxu0 0.0
    %170 = vmatpush1.msra.mxu0 0.0
    %171 = vmatprep.subr.mxu0 0.0
    %172 = vmatpush1.msra.mxu0 0.0
    %173 = vmatprep.subr.mxu0 0.0
    %174 = vmatpush1.msra.mxu0 0.0
    %175 = vmatprep.subr.mxu0 0.0
    %176 = vmatpush1.msra.mxu0 0.0
    %177 = vmatprep.subr.mxu0 0.0
    %178 = vmatpush1.msra.mxu0 0.0
    %179 = vmatprep.subr.mxu0 0.0
    %180 = vmatpush1.msra.mxu0 0.0
    %181 = vmatprep.subr.mxu0 0.0
    %182 = vmatpush1.msra.mxu0 0.0
    %183 = vmatprep.subr.mxu0 0.0
    %184 = vmatpush1.msra.mxu0 0.0
    %185 = vmatprep.subr.mxu0 0.0
    %186 = vmatpush1.msra.mxu0 0.0
    %187 = vmatprep.subr.mxu0 0.0
    %188 = vmatpush1.msra.mxu0 0.0
    %189 = vmatprep.subr.mxu0 0.0
    %190 = vmatpush1.msra.mxu0 0.0
    %191 = vmatprep.subr.mxu0 0.0
    %192 = vmatpush1.msra.mxu0 0.0
    %193 = vmatprep.subr.mxu0 0.0
    %194 = vmatpush1.msra.mxu0 0.0
    %195 = vmatprep.subr.mxu0 0.0
    %196 = vmatpush1.msra.mxu0 0.0
    %197 = vmatprep.mubr.f32.mxu0 0.0
    %198 = vmatmul.mubr.f32.gmra.mrb[0].mxu0 %v131
    %v199 = vpop.f32.mrb[0].mxu0
    %v200 = vadd.f32 0.0, %v199
    %v201 = vpop.f32.mrb[0].mxu0
    %202 = vdwg.mxu0
    %203 = vmatprep.subr.mxu0 0.0
    %204 = vmatpush1.msra.mxu0 %v123
    %205 = vmatprep.subr.mxu0 0.0
    %206 = vmatpush1.msra.mxu0 %v124
    %207 = vmatprep.subr.mxu0 0.0
    %208 = vmatpush1.msra.mxu0 %v125
    %209 = vmatprep.subr.mxu0 0.0
    %210 = vmatpush1.msra.mxu0 %v126
    %211 = vmatprep.subr.mxu0 0.0
    %212 = vmatpush1.msra.mxu0 0.0
    %213 = vmatprep.subr.mxu0 0.0
    %214 = vmatpush1.msra.mxu0 0.0
    %215 = vmatprep.subr.mxu0 0.0
    %216 = vmatpush1.msra.mxu0 0.0
    %217 = vmatprep.subr.mxu0 0.0
    %218 = vmatpush1.msra.mxu0 0.0
    %219 = vmatprep.subr.mxu0 0.0
    %220 = vmatpush1.msra.mxu0 0.0
    %221 = vmatprep.subr.mxu0 0.0
    %222 = vmatpush1.msra.mxu0 0.0
    %223 = vmatprep.subr.mxu0 0.0
    %224 = vmatpush1.msra.mxu0 0.0
    %225 = vmatprep.subr.mxu0 0.0
    %226 = vmatpush1.msra.mxu0 0.0
    %227 = vmatprep.subr.mxu0 0.0
    %228 = vmatpush1.msra.mxu0 0.0
    %229 = vmatprep.subr.mxu0 0.0
    %230 = vmatpush1.msra.mxu0 0.0
    %231 = vmatprep.subr.mxu0 0.0
    %232 = vmatpush1.msra.mxu0 0.0
    %233 = vmatprep.subr.mxu0 0.0
    %234 = vmatpush1.msra.mxu0 0.0
    %235 = vmatprep.subr.mxu0 0.0
    %236 = vmatpush1.msra.mxu0 0.0
    %237 = vmatprep.subr.mxu0 0.0
    %238 = vmatpush1.msra.mxu0 0.0
    %239 = vmatprep.subr.mxu0 0.0
    %240 = vmatpush1.msra.mxu0 0.0
    %241 = vmatprep.subr.mxu0 0.0
    %242 = vmatpush1.msra.mxu0 0.0
    %243 = vmatprep.subr.mxu0 0.0
    %244 = vmatpush1.msra.mxu0 0.0
    %245 = vmatprep.subr.mxu0 0.0
    %246 = vmatpush1.msra.mxu0 0.0
    %247 = vmatprep.subr.mxu0 0.0
    %248 = vmatpush1.msra.mxu0 0.0
    %249 = vmatprep.subr.mxu0 0.0
    %250 = vmatpush1.msra.mxu0 0.0
    %251 = vmatprep.subr.mxu0 0.0
    %252 = vmatpush1.msra.mxu0 0.0
    %253 = vmatprep.subr.mxu0 0.0
    %254 = vmatpush1.msra.mxu0 0.0
    %255 = vmatprep.subr.mxu0 0.0
    %256 = vmatpush1.msra.mxu0 0.0
    %257 = vmatprep.subr.mxu0 0.0
    %258 = vmatpush1.msra.mxu0 0.0
    %259 = vmatprep.subr.mxu0 0.0
    %260 = vmatpush1.msra.mxu0 0.0
    %261 = vmatprep.subr.mxu0 0.0
    %262 = vmatpush1.msra.mxu0 0.0
    %263 = vmatprep.subr.mxu0 0.0
    %264 = vmatpush1.msra.mxu0 0.0
    %265 = vmatprep.subr.mxu0 0.0
    %266 = vmatpush1.msra.mxu0 0.0
    %267 = vmatprep.mubr.f32.mxu0 0.0
    %268 = vmatmul.mubr.f32.gmra.mrb[0].mxu0 %v50
    %v269 = vpop.f32.mrb[0].mxu0
    %v270 = vadd.f32 %v200, %v269
    %v271 = vpop.f32.mrb[0].mxu0
    %272 = vdwg.mxu0
    %v273 = vld [vmem:[%s5] sm:$0x1]
    %v275 = vlaneseq
    %v276 = vshrl.u32 %v275, 7
    %v277 = vsub.s32 0, %v276
    %v278 = vrot.slane %v273, %v277
    %v280 = vadd.f32 %v270, %v278
    %v281 = vmax.f32 %v280, 0.0
    %v282 = vld [vmem:[%s6] sm:$0xff]
    %v283 = vld [vmem:[%s6 + $0x8] sm:$0xff]
    %v284 = vld [vmem:[%s6 + $0x10] sm:$0xff]
    %v285 = vld [vmem:[%s6 + $0x18] sm:$0xff]
    %v286 = vld [vmem:[%s7] sm:$0xff]
    %v287 = vld [vmem:[%s7 + $0x8] sm:$0xff]
    %288 = vmatprep.subr.mxu0 0.0
    %289 = vmatpush1.msra.mxu0 %v286
    %290 = vmatprep.subr.mxu0 0.0
    %291 = vmatpush1.msra.mxu0 %v287
    %292 = vmatprep.subr.mxu0 0.0
    %293 = vmatpush1.msra.mxu0 0.0
    %294 = vmatprep.subr.mxu0 0.0
    %295 = vmatpush1.msra.mxu0 0.0
    %296 = vmatprep.subr.mxu0 0.0
    %297 = vmatpush1.msra.mxu0 0.0
    %298 = vmatprep.subr.mxu0 0.0
    %299 = vmatpush1.msra.mxu0 0.0
    %300 = vmatprep.subr.mxu0 0.0
    %301 = vmatpush1.msra.mxu0 0.0
    %302 = vmatprep.subr.mxu0 0.0
    %303 = vmatpush1.msra.mxu0 0.0
    %304 = vmatprep.subr.mxu0 0.0
    %305 = vmatpush1.msra.mxu0 0.0
    %306 = vmatprep.subr.mxu0 0.0
    %307 = vmatpush1.msra.mxu0 0.0
    %308 = vmatprep.subr.mxu0 0.0
    %309 = vmatpush1.msra.mxu0 0.0
    %310 = vmatprep.subr.mxu0 0.0
    %311 = vmatpush1.msra.mxu0 0.0
    %312 = vmatprep.subr.mxu0 0.0
    %313 = vmatpush1.msra.mxu0 0.0
    %314 = vmatprep.subr.mxu0 0.0
    %315 = vmatpush1.msra.mxu0 0.0
    %316 = vmatprep.subr.mxu0 0.0
    %317 = vmatpush1.msra.mxu0 0.0
    %318 = vmatprep.subr.mxu0 0.0
    %319 = vmatpush1.msra.mxu0 0.0
    %320 = vmatprep.subr.mxu0 0.0
    %321 = vmatpush1.msra.mxu0 0.0
    %322 = vmatprep.subr.mxu0 0.0
    %323 = vmatpush1.msra.mxu0 0.0
    %324 = vmatprep.subr.mxu0 0.0
    %325 = vmatpush1.msra.mxu0 0.0
    %326 = vmatprep.subr.mxu0 0.0
    %327 = vmatpush1.msra.mxu0 0.0
    %328 = vmatprep.subr.mxu0 0.0
    %329 = vmatpush1.msra.mxu0 0.0
    %330 = vmatprep.subr.mxu0 0.0
    %331 = vmatpush1.msra.mxu0 0.0
    %332 = vmatprep.subr.mxu0 0.0
    %333 = vmatpush1.msra.mxu0 0.0
    %334 = vmatprep.subr.mxu0 0.0
    %335 = vmatpush1.msra.mxu0 0.0
    %336 = vmatprep.subr.mxu0 0.0
    %337 = vmatpush1.msra.mxu0 0.0
    %338 = vmatprep.subr.mxu0 0.0
    %339 = vmatpush1.msra.mxu0 0.0
    %340 = vmatprep.subr.mxu0 0.0
    %341 = vmatpush1.msra.mxu0 0.0
    %342 = vmatprep.subr.mxu0 0.0
    %343 = vmatpush1.msra.mxu0 0.0
    %344 = vmatprep.subr.mxu0 0.0
    %345 = vmatpush1.msra.mxu0 0.0
    %346 = vmatprep.subr.mxu0 0.0
    %347 = vmatpush1.msra.mxu0 0.0
    %348 = vmatprep.subr.mxu0 0.0
    %349 = vmatpush1.msra.mxu0 0.0
    %350 = vmatprep.subr.mxu0 0.0
    %351 = vmatpush1.msra.mxu0 0.0
    %352 = vmatprep.mubr.f32.mxu0 0.0
    %353 = vmatmul.mubr.f32.gmra.mrb[0].mxu0 %v131
    %v354 = vpop.f32.mrb[0].mxu0
    %v355 = vadd.f32 0.0, %v354
    %v356 = vpop.f32.mrb[0].mxu0
    %357 = vdwg.mxu0
    %358 = vmatprep.subr.mxu0 0.0
    %359 = vmatpush1.msra.mxu0 %v282
    %360 = vmatprep.subr.mxu0 0.0
    %361 = vmatpush1.msra.mxu0 %v283
    %362 = vmatprep.subr.mxu0 0.0
    %363 = vmatpush1.msra.mxu0 %v284
    %364 = vmatprep.subr.mxu0 0.0
    %365 = vmatpush1.msra.mxu0 %v285
    %366 = vmatprep.subr.mxu0 0.0
    %367 = vmatpush1.msra.mxu0 0.0
    %368 = vmatprep.subr.mxu0 0.0
    %369 = vmatpush1.msra.mxu0 0.0
    %370 = vmatprep.subr.mxu0 0.0
    %371 = vmatpush1.msra.mxu0 0.0
    %372 = vmatprep.subr.mxu0 0.0
    %373 = vmatpush1.msra.mxu0 0.0
    %374 = vmatprep.subr.mxu0 0.0
    %375 = vmatpush1.msra.mxu0 0.0
    %376 = vmatprep.subr.mxu0 0.0
    %377 = vmatpush1.msra.mxu0 0.0
    %378 = vmatprep.subr.mxu0 0.0
    %379 = vmatpush1.msra.mxu0 0.0
    %380 = vmatprep.subr.mxu0 0.0
    %381 = vmatpush1.msra.mxu0 0.0
    %382 = vmatprep.subr.mxu0 0.0
    %383 = vmatpush1.msra.mxu0 0.0
    %384 = vmatprep.subr.mxu0 0.0
    %385 = vmatpush1.msra.mxu0 0.0
    %386 = vmatprep.subr.mxu0 0.0
    %387 = vmatpush1.msra.mxu0 0.0
    %388 = vmatprep.subr.mxu0 0.0
    %389 = vmatpush1.msra.mxu0 0.0
    %390 = vmatprep.subr.mxu0 0.0
    %391 = vmatpush1.msra.mxu0 0.0
    %392 = vmatprep.subr.mxu0 0.0
    %393 = vmatpush1.msra.mxu0 0.0
    %394 = vmatprep.subr.mxu0 0.0
    %395 = vmatpush1.msra.mxu0 0.0
    %396 = vmatprep.subr.mxu0 0.0
    %397 = vmatpush1.msra.mxu0 0.0
    %398 = vmatprep.subr.mxu0 0.0
    %399 = vmatpush1.msra.mxu0 0.0
    %400 = vmatprep.subr.mxu0 0.0
    %401 = vmatpush1.msra.mxu0 0.0
    %402 = vmatprep.subr.mxu0 0.0
    %403 = vmatpush1.msra.mxu0 0.0
    %404 = vmatprep.subr.mxu0 0.0
    %405 = vmatpush1.msra.mxu0 0.0
    %406 = vmatprep.subr.mxu0 0.0
    %407 = vmatpush1.msra.mxu0 0.0
    %408 = vmatprep.subr.mxu0 0.0
    %409 = vmatpush1.msra.mxu0 0.0
    %410 = vmatprep.subr.mxu0 0.0
    %411 = vmatpush1.msra.mxu0 0.0
    %412 = vmatprep.subr.mxu0 0.0
    %413 = vmatpush1.msra.mxu0 0.0
    %414 = vmatprep.subr.mxu0 0.0
    %415 = vmatpush1.msra.mxu0 0.0
    %416 = vmatprep.subr.mxu0 0.0
    %417 = vmatpush1.msra.mxu0 0.0
    %418 = vmatprep.subr.mxu0 0.0
    %419 = vmatpush1.msra.mxu0 0.0
    %420 = vmatprep.subr.mxu0 0.0
    %421 = vmatpush1.msra.mxu0 0.0
    %422 = vmatprep.mubr.f32.mxu0 0.0
    %423 = vmatmul.mubr.f32.gmra.mrb[0].mxu0 %v50
    %v424 = vpop.f32.mrb[0].mxu0
    %v425 = vadd.f32 %v355, %v424
    %v426 = vpop.f32.mrb[0].mxu0
    %427 = vdwg.mxu0
    %v428 = vld [vmem:[%s8] sm:$0xff]
    %v429 = vld [vmem:[%s8 + $0x8] sm:$0xff]
    %v431 = vsel %vm129, %v281, 0
    %433 = vmatprep.subr.mxu0 0.0
    %434 = vmatpush1.msra.mxu0 %v428
    %435 = vmatprep.subr.mxu0 0.0
    %436 = vmatpush1.msra.mxu0 %v429
    %437 = vmatprep.subr.mxu0 0.0
    %438 = vmatpush1.msra.mxu0 0.0
    %439 = vmatprep.subr.mxu0 0.0
    %440 = vmatpush1.msra.mxu0 0.0
    %441 = vmatprep.subr.mxu0 0.0
    %442 = vmatpush1.msra.mxu0 0.0
    %443 = vmatprep.subr.mxu0 0.0
    %444 = vmatpush1.msra.mxu0 0.0
    %445 = vmatprep.subr.mxu0 0.0
    %446 = vmatpush1.msra.mxu0 0.0
    %447 = vmatprep.subr.mxu0 0.0
    %448 = vmatpush1.msra.mxu0 0.0
    %449 = vmatprep.subr.mxu0 0.0
    %450 = vmatpush1.msra.mxu0 0.0
    %451 = vmatprep.subr.mxu0 0.0
    %452 = vmatpush1.msra.mxu0 0.0
    %453 = vmatprep.subr.mxu0 0.0
    %454 = vmatpush1.msra.mxu0 0.0
    %455 = vmatprep.subr.mxu0 0.0
    %456 = vmatpush1.msra.mxu0 0.0
    %457 = vmatprep.subr.mxu0 0.0
    %458 = vmatpush1.msra.mxu0 0.0
    %459 = vmatprep.subr.mxu0 0.0
    %460 = vmatpush1.msra.mxu0 0.0
    %461 = vmatprep.subr.mxu0 0.0
    %462 = vmatpush1.msra.mxu0 0.0
    %463 = vmatprep.subr.mxu0 0.0
    %464 = vmatpush1.msra.mxu0 0.0
    %465 = vmatprep.subr.mxu0 0.0
    %466 = vmatpush1.msra.mxu0 0.0
    %467 = vmatprep.subr.mxu0 0.0
    %468 = vmatpush1.msra.mxu0 0.0
    %469 = vmatprep.subr.mxu0 0.0
    %470 = vmatpush1.msra.mxu0 0.0
    %471 = vmatprep.subr.mxu0 0.0
    %472 = vmatpush1.msra.mxu0 0.0
    %473 = vmatprep.subr.mxu0 0.0
    %474 = vmatpush1.msra.mxu0 0.0
    %475 = vmatprep.subr.mxu0 0.0
    %476 = vmatpush1.msra.mxu0 0.0
    %477 = vmatprep.subr.mxu0 0.0
    %478 = vmatpush1.msra.mxu0 0.0
    %479 = vmatprep.subr.mxu0 0.0
    %480 = vmatpush1.msra.mxu0 0.0
    %481 = vmatprep.subr.mxu0 0.0
    %482 = vmatpush1.msra.mxu0 0.0
    %483 = vmatprep.subr.mxu0 0.0
    %484 = vmatpush1.msra.mxu0 0.0
    %485 = vmatprep.subr.mxu0 0.0
    %486 = vmatpush1.msra.mxu0 0.0
    %487 = vmatprep.subr.mxu0 0.0
    %488 = vmatpush1.msra.mxu0 0.0
    %489 = vmatprep.subr.mxu0 0.0
    %490 = vmatpush1.msra.mxu0 0.0
    %491 = vmatprep.subr.mxu0 0.0
    %492 = vmatpush1.msra.mxu0 0.0
    %493 = vmatprep.subr.mxu0 0.0
    %494 = vmatpush1.msra.mxu0 0.0
    %495 = vmatprep.subr.mxu0 0.0
    %496 = vmatpush1.msra.mxu0 0.0
    %497 = vmatprep.mubr.f32.mxu0 0.0
    %498 = vmatmul.mubr.f32.gmra.mrb[0].mxu0 %v431
    %v499 = vpop.f32.mrb[0].mxu0
    %v500 = vadd.f32 0.0, %v499
    %v501 = vpop.f32.mrb[0].mxu0
    %502 = vdwg.mxu0
    %v503 = vadd.f32 %v425, %v500
    %v504 = vld [vmem:[%s9] sm:$0x1]
    %v506 = vlaneseq
    %v507 = vshrl.u32 %v506, 7
    %v508 = vsub.s32 0, %v507
    %v509 = vrot.slane %v504, %v508
    %v511 = vadd.f32 %v503, %v509
    %v512 = vmax.f32 %v511, 0.0
    %513 = vrot.lane.b32.xlu0 %v122, 32
    %v514 = vpop.permute.xlu0 %513
    %516 = vrot.lane.b32.xlu0 %v281, 48
    %v517 = vpop.permute.xlu0 %516
    %520 = vrot.lane.b32.xlu0 %v512, 64
    %v521 = vpop.permute.xlu0 %520
    %v523 = vsel %vm48, %v36, %v514
    %vm524 = vcmask 392192
    %v525 = vsel %vm524, %v523, %v517
    %vm526 = vcmask 523264
    %v527 = vsel %vm526, %v525, %v521
    %vm528 = vcmask 654336
    %v529 = vsel %vm528, %v527, 0.0
    %530 = vst [vmem:[#allocation2] sm:$0xff] %v529
    // Predicated region
    $region42: #{_dense_block_jit.1} parent=1 // pred_check
      _
    $region43: #{_dense_block_jit.1} parent=1 // pred_check_branch
      %532 = sbr.rel (0) target = $region45
    $region44: #{_dense_block_jit.1} parent=1 // pred_region
      %s534 = ssub.s32 128, 128
      %535 = vsyncadd [#allocation3], %s534
      %s537 = sshll.u32 [#allocation2], 4
      %s538 = int_to_ptr.vmem [resolvable:$true] %s537
      %540 = dma.vmem_to_hbm [thread:$0]  %s538, 128, %s10, [#allocation3]
    $region45: #{_dense_block_jit.1} parent=1 // pred_fallthru
      _
    // Predicated region
    $region46: #{_dense_block_jit.1} parent=1 // pred_check
      _
    $region47: #{_dense_block_jit.1} parent=1 // pred_check_branch
      %542 = sbr.rel (0) target = $region49
    $region48: #{_dense_block_jit.1} parent=1 // pred_region
      %543 = dma.done [#allocation3], 128
    $region49: #{_dense_block_jit.1} parent=1 // pred_fallthru
      _
    %544 = vsyncpa [#allocation3], 1

</llo_original>
